<compile_context>
chip_gen: v5e
topology: v5e:2x2
jax: 0.10.0
libtpu: 0.0.40
codegen_flags: <defaults>
</compile_context>

<pallas_src>
import functools

import jax
import jax.numpy as jnp
from jax import lax
from jax.experimental import pallas as pl
from jax.experimental.pallas import tpu as pltpu


def _mlp_kernel(x_ref, w1_ref, b1_ref, w2_ref, b2_ref, w3_ref, b3_ref, o_ref,
                *, chunk):
    # x_ref: (8, TB) -- features on sublanes, batch on lanes (lane-dense).
    # Weights/biases are tiny and VMEM-resident across the whole grid.
    w1 = w1_ref[...]
    b1 = b1_ref[...]
    w2 = w2_ref[...]
    b2 = b2_ref[...]
    w3 = w3_ref[...]
    b3 = b3_ref[...]

    tb = x_ref.shape[1]          # static block width
    n_chunks = tb // chunk       # wrapper guarantees tb % chunk == 0

    def body(c, carry):
        off = pl.multiple_of(c * chunk, chunk)
        xs = x_ref[:, pl.ds(off, chunk)]                        # (8, chunk)
        # Layer 1: (6,8) @ (8,chunk) + (6,1) -> ReLU
        h1 = jnp.maximum(
            jnp.dot(w1, xs, preferred_element_type=jnp.float32) + b1, 0.0)
        # Layer 2: (4,6) @ (6,chunk) + (4,1) -> ReLU
        h2 = jnp.maximum(
            jnp.dot(w2, h1, preferred_element_type=jnp.float32) + b2, 0.0)
        # Layer 3: (1,4) @ (4,chunk) + (1,1) -> Sigmoid (EUP exp path)
        z = jnp.dot(w3, h2, preferred_element_type=jnp.float32) + b3
        o_ref[:, pl.ds(off, chunk)] = jax.nn.sigmoid(z).astype(o_ref.dtype)
        return carry

    lax.fori_loop(0, n_chunks, body, 0, unroll=False)


def _round_up(n, m):
    return ((n + m - 1) // m) * m


def logi_reg_diabetes_forward_fm(x_fm, params, *, tb=128 * 1024, chunk=4096):
    """Feature-major forward pass (no wrapper-side copies).

    x_fm: (8, B) float32 -- features on the leading axis.
    params: PyTorch-layout params {w1:(6,8), b1:(6,), w2:(4,6), b2:(4,),
                                   w3:(1,4), b3:(1,)}.
    tb:    batch tile (lanes per grid step).  Default 128K lanes -> ~4 MB of
           input DMA per step, which amortizes the ~0.35 us per-step overhead
           on every generation and (with in-kernel chunking) keeps the total
           VMEM footprint ~17 MB, under v7x's 64 MiB physical VMEM.
    chunk: lanes per in-kernel compute chunk (keeps h1/h2/z small instead of
           materializing (6,tb)/(4,tb)/(1,tb) VMEM temporaries).
    Returns: (B, 1) float32 probabilities.
    """
    f_in, B = x_fm.shape
    assert f_in == 8, "expected (8, B) feature-major input"

    w1, b1 = params["w1"], params["b1"].reshape(6, 1)
    w2, b2 = params["w2"], params["b2"].reshape(4, 1)
    w3, b3 = params["w3"], params["b3"].reshape(1, 1)

    # Clamp the tile to the (128-rounded) batch so a small batch never DMAs a
    # mostly-padded 128K tile; keep everything a multiple of 128 lanes and
    # keep tb a multiple of the in-kernel chunk.
    tb = _round_up(max(128, min(int(tb), _round_up(B, 128))), 128)
    chunk = _round_up(max(128, min(int(chunk), tb)), 128)
    tb = (tb // chunk) * chunk
    n_tiles = pl.cdiv(B, tb)     # last block may be partial; Pallas masks it.

    def const_spec(a):
        # Whole-array block, constant index map -> stays resident in VMEM.
        return pl.BlockSpec(a.shape, lambda i: (0,) * a.ndim)

    flops = 2 * B * (8 * 6 + 6 * 4 + 4 * 1)
    param_bytes = 4 * (6 * 8 + 6 + 4 * 6 + 4 + 1 * 4 + 1)
    bytes_accessed = 4 * (8 * B + 1 * B) + param_bytes   # ~36 B per row

    out_t = pl.pallas_call(
        functools.partial(_mlp_kernel, chunk=chunk),
        out_shape=jax.ShapeDtypeStruct((1, B), jnp.float32),
        grid=(n_tiles,),
        in_specs=[
            pl.BlockSpec((8, tb), lambda i: (0, i)),   # streamed batch tiles
            const_spec(w1), const_spec(b1),
            const_spec(w2), const_spec(b2),
            const_spec(w3), const_spec(b3),
        ],
        out_specs=pl.BlockSpec((1, tb), lambda i: (0, i)),  # lane-dense output
        compiler_params=pltpu.CompilerParams(
            dimension_semantics=("parallel",),       # megacore sharding (v7x)
            vmem_limit_bytes=48 * 1024 * 1024,       # > 16/32 MiB defaults,
        ),                                           # < v7x 64 MiB physical
        cost_estimate=pl.CostEstimate(
            flops=flops, transcendentals=B, bytes_accessed=bytes_accessed),
    )(x_fm, w1, b1, w2, b2, w3, b3)

    return out_t.T                                   # (1,B) -> (B,1), trivial


def logi_reg_diabetes_forward(x, params, *, tb=128 * 1024, chunk=4096):
    """PyTorch-convention forward pass.  x: (B, 8) float32 -> (B, 1).

    Prefer `logi_reg_diabetes_forward_fm` with (8, B) input when the producer
    can emit feature-major data: the transpose below is a standalone HBM
    round trip (~64 B/row) that roughly doubles total traffic for this
    memory-bound op.
    """
    # TODO(synk): fuse/eliminate this transpose into the upstream producer.
    return logi_reg_diabetes_forward_fm(x.T, params, tb=tb, chunk=chunk)


def init_params(key):
    """PyTorch nn.Linear default init: U(-1/sqrt(fan_in), 1/sqrt(fan_in))."""
    def linear(key, fan_in, fan_out):
        kw, kb = jax.random.split(key)
        bound = 1.0 / jnp.sqrt(float(fan_in))
        w = jax.random.uniform(kw, (fan_out, fan_in), jnp.float32, -bound, bound)
        b = jax.random.uniform(kb, (fan_out,), jnp.float32, -bound, bound)
        return w, b

    k1, k2, k3 = jax.random.split(key, 3)
    w1, b1 = linear(k1, 8, 6)
    w2, b2 = linear(k2, 6, 4)
    w3, b3 = linear(k3, 4, 1)
    return {"w1": w1, "b1": b1, "w2": w2, "b2": b2, "w3": w3, "b3": b3}


def reference_forward(x, params):
    h1 = jnp.maximum(x @ params["w1"].T + params["b1"], 0.0)
    h2 = jnp.maximum(h1 @ params["w2"].T + params["b2"], 0.0)
    return jax.nn.sigmoid(h2 @ params["w3"].T + params["b3"])


if __name__ == "__main__":
    key = jax.random.PRNGKey(0)
    kx, kp = jax.random.split(key)

    # Small-but-representative shapes: 8 input features (per Linear(8, 6));
    # batch not a multiple of 128 so the partial-last-block path is exercised
    # (no explicit padding anywhere).
    B = 1000
    x = jax.random.normal(kx, (B, 8), jnp.float32)
    params = init_params(kp)
    ref = reference_forward(x, params)

    # 1) Default PyTorch-convention path: tb is automatically clamped from
    #    128K down to 1024 lanes for this tiny batch (single grid step).
    out = jax.block_until_ready(logi_reg_diabetes_forward(x, params))
    assert out.shape == (B, 1)
    assert jnp.allclose(out, ref, atol=1e-5, rtol=1e-5), "mismatch (default path)"

    # 2) Feature-major fast path with small tiles to exercise a multi-step
    #    grid, the in-kernel chunk loop, and partial-block masking.
    out2 = jax.block_until_ready(
        logi_reg_diabetes_forward_fm(x.T, params, tb=512, chunk=256))
    assert out2.shape == (B, 1)
    assert jnp.allclose(out2, ref, atol=1e-5, rtol=1e-5), "mismatch (fm path)"

    print("KERNEL_OK")
</pallas_src>

<mosaic_0001>
module attributes {stable_mosaic.version = 11 : i64} {
  func.func @_mlp_kernel(%arg0: i32, %arg1: memref<8x1024xf32, #tpu.memory_space<vmem>>, %arg2: memref<6x8xf32, #tpu.memory_space<vmem>>, %arg3: memref<6x1xf32, #tpu.memory_space<vmem>>, %arg4: memref<4x6xf32, #tpu.memory_space<vmem>>, %arg5: memref<4x1xf32, #tpu.memory_space<vmem>>, %arg6: memref<1x4xf32, #tpu.memory_space<vmem>>, %arg7: memref<1x1xf32, #tpu.memory_space<vmem>>, %arg8: memref<1x1024xf32, #tpu.memory_space<vmem>>) attributes {dimension_semantics = [#tpu.dimension_semantics<parallel>], iteration_bounds = array<i64: 1>, scalar_prefetch = 0 : i64, scratch_operands = 0 : i64, tpu.core_type = #tpu.core_type<tc>, window_params = [{transform_indices = @transform_0, window_bounds = array<i64: 8, 1024>}, {pipeline_mode = #tpu.pipeline_mode<synchronous>, transform_indices = @transform_1, window_bounds = array<i64: 6, 8>}, {pipeline_mode = #tpu.pipeline_mode<synchronous>, transform_indices = @transform_2, window_bounds = array<i64: 6, 1>}, {pipeline_mode = #tpu.pipeline_mode<synchronous>, transform_indices = @transform_3, window_bounds = array<i64: 4, 6>}, {pipeline_mode = #tpu.pipeline_mode<synchronous>, transform_indices = @transform_4, window_bounds = array<i64: 4, 1>}, {pipeline_mode = #tpu.pipeline_mode<synchronous>, transform_indices = @transform_5, window_bounds = array<i64: 1, 4>}, {pipeline_mode = #tpu.pipeline_mode<synchronous>, transform_indices = @transform_6, window_bounds = array<i64: 1, 1>}, {transform_indices = @transform_7, window_bounds = array<i64: 1, 1024>}]} {
    %c0 = arith.constant 0 : index
    %c0_0 = arith.constant 0 : index
    %0 = vector.load %arg2[%c0, %c0_0] : memref<6x8xf32, #tpu.memory_space<vmem>>, vector<6x8xf32>
    %c0_1 = arith.constant 0 : index
    %c0_2 = arith.constant 0 : index
    %1 = vector.load %arg3[%c0_1, %c0_2] : memref<6x1xf32, #tpu.memory_space<vmem>>, vector<6x1xf32>
    %c0_3 = arith.constant 0 : index
    %c0_4 = arith.constant 0 : index
    %2 = vector.load %arg4[%c0_3, %c0_4] : memref<4x6xf32, #tpu.memory_space<vmem>>, vector<4x6xf32>
    %c0_5 = arith.constant 0 : index
    %c0_6 = arith.constant 0 : index
    %3 = vector.load %arg5[%c0_5, %c0_6] : memref<4x1xf32, #tpu.memory_space<vmem>>, vector<4x1xf32>
    %c0_7 = arith.constant 0 : index
    %c0_8 = arith.constant 0 : index
    %4 = vector.load %arg6[%c0_7, %c0_8] : memref<1x4xf32, #tpu.memory_space<vmem>>, vector<1x4xf32>
    %c0_9 = arith.constant 0 : index
    %c0_10 = arith.constant 0 : index
    %5 = vector.load %arg7[%c0_9, %c0_10] : memref<1x1xf32, #tpu.memory_space<vmem>>, vector<1x1xf32>
    %c0_i32 = arith.constant 0 : i32
    %c1024_i32 = arith.constant 1024 : i32
    %6 = arith.muli %c0_i32, %c1024_i32 : i32
    %7 = tpu.assume_multiple %6, 1024 : i32
    %c0_11 = arith.constant 0 : index
    %8 = arith.index_cast %7 : i32 to index
    %9 = vector.load %arg1[%c0_11, %8] : memref<8x1024xf32, #tpu.memory_space<vmem>>, vector<8x1024xf32>
    %cst = arith.constant dense<0.000000e+00> : vector<6x1024xf32>
    %10 = tpu.matmul %0, %9, %cst {dimension_numbers = #tpu.dot_dimension_numbers<[1], [0], [0], [1], [0, 0, 1, 1], [], []>} : vector<6x8xf32>, vector<8x1024xf32>, vector<6x1024xf32> -> vector<6x1024xf32>
    %11 = vector.broadcast %1 : vector<6x1xf32> to vector<6x1024xf32>
    %12 = arith.addf %10, %11 : vector<6x1024xf32>
    %cst_12 = arith.constant 0.000000e+00 : f32
    %13 = vector.broadcast %cst_12 : f32 to vector<6x1024xf32>
    %14 = arith.maximumf %12, %13 : vector<6x1024xf32>
    %cst_13 = arith.constant dense<0.000000e+00> : vector<4x1024xf32>
    %15 = tpu.matmul %2, %14, %cst_13 {dimension_numbers = #tpu.dot_dimension_numbers<[1], [0], [0], [1], [0, 0, 1, 1], [], []>} : vector<4x6xf32>, vector<6x1024xf32>, vector<4x1024xf32> -> vector<4x1024xf32>
    %16 = vector.broadcast %3 : vector<4x1xf32> to vector<4x1024xf32>
    %17 = arith.addf %15, %16 : vector<4x1024xf32>
    %cst_14 = arith.constant 0.000000e+00 : f32
    %18 = vector.broadcast %cst_14 : f32 to vector<4x1024xf32>
    %19 = arith.maximumf %17, %18 : vector<4x1024xf32>
    %cst_15 = arith.constant dense<0.000000e+00> : vector<1x1024xf32>
    %20 = tpu.matmul %4, %19, %cst_15 {dimension_numbers = #tpu.dot_dimension_numbers<[1], [0], [0], [1], [0, 0, 1, 1], [], []>} : vector<1x4xf32>, vector<4x1024xf32>, vector<1x1024xf32> -> vector<1x1024xf32>
    %21 = vector.broadcast %5 : vector<1x1xf32> to vector<1x1024xf32>
    %22 = arith.addf %20, %21 : vector<1x1024xf32>
    %23 = arith.negf %22 : vector<1x1024xf32>
    %24 = math.exp %23 : vector<1x1024xf32>
    %cst_16 = arith.constant 1.000000e+00 : f32
    %25 = vector.broadcast %cst_16 : f32 to vector<1x1024xf32>
    %26 = arith.addf %25, %24 : vector<1x1024xf32>
    %27 = arith.divf %25, %26 : vector<1x1024xf32>
    %c0_17 = arith.constant 0 : index
    %28 = arith.index_cast %7 : i32 to index
    %29 = vector.load %arg8[%c0_17, %28] : memref<1x1024xf32, #tpu.memory_space<vmem>>, vector<1x1024xf32>
    tpu.vector_store %arg8[%c0_17, %28], %27 {strides = array<i32>} : memref<1x1024xf32, #tpu.memory_space<vmem>>, vector<1x1024xf32>,
    %c1_i32 = arith.constant 1 : i32
    return
  }
  func.func @transform_0(%arg0: i32) -> (i32, i32) {
    %c0_i32 = arith.constant 0 : i32
    %c0_i32_0 = arith.constant 0 : i32
    return %c0_i32, %arg0 : i32, i32
  }
  func.func @transform_1(%arg0: i32) -> (i32, i32) {
    %c0_i32 = arith.constant 0 : i32
    %c0_i32_0 = arith.constant 0 : i32
    %c0_i32_1 = arith.constant 0 : i32
    return %c0_i32, %c0_i32_0 : i32, i32
  }
  func.func @transform_2(%arg0: i32) -> (i32, i32) {
    %c0_i32 = arith.constant 0 : i32
    %c0_i32_0 = arith.constant 0 : i32
    %c0_i32_1 = arith.constant 0 : i32
    return %c0_i32, %c0_i32_0 : i32, i32
  }
  func.func @transform_3(%arg0: i32) -> (i32, i32) {
    %c0_i32 = arith.constant 0 : i32
    %c0_i32_0 = arith.constant 0 : i32
    %c0_i32_1 = arith.constant 0 : i32
    return %c0_i32, %c0_i32_0 : i32, i32
  }
  func.func @transform_4(%arg0: i32) -> (i32, i32) {
    %c0_i32 = arith.constant 0 : i32
    %c0_i32_0 = arith.constant 0 : i32
    %c0_i32_1 = arith.constant 0 : i32
    return %c0_i32, %c0_i32_0 : i32, i32
  }
  func.func @transform_5(%arg0: i32) -> (i32, i32) {
    %c0_i32 = arith.constant 0 : i32
    %c0_i32_0 = arith.constant 0 : i32
    %c0_i32_1 = arith.constant 0 : i32
    return %c0_i32, %c0_i32_0 : i32, i32
  }
  func.func @transform_6(%arg0: i32) -> (i32, i32) {
    %c0_i32 = arith.constant 0 : i32
    %c0_i32_0 = arith.constant 0 : i32
    %c0_i32_1 = arith.constant 0 : i32
    return %c0_i32, %c0_i32_0 : i32, i32
  }
  func.func @transform_7(%arg0: i32) -> (i32, i32) {
    %c0_i32 = arith.constant 0 : i32
    %c0_i32_0 = arith.constant 0 : i32
    return %c0_i32, %arg0 : i32, i32
  }
}

</mosaic_0001>

<llo_original>
// kernel: tpu_custom_call.1
$region0: #{tpu_custom_call.1}
  #allocation0 [shape = 'u32[]', space=smem, size = 0x4, offset = 0x4, fixed_abs, tag = 'smem constant byte address 0x4 - core index']
  #allocation1 [shape = 'u32[72,128]{1,0:T(1,128)}', space=vmem, size = 0x9000, scoped, tag = 'internal scratch']
  #allocation2 [shape = 'f32[1,1]{1,0:T(1,128)S(1)}', space=vmem, size = 0x200, scoped, tag = 'scoped memory for tpu_custom_call.1']
  %s0 = inlined_call_operand.hbm [shape: f32[8,1000], index: 0, kind: input, shape index: {}]
  %s1 = inlined_call_operand.vmem [shape: f32[6,8], index: 1, kind: input, shape index: {}]
  %s2 = inlined_call_operand.vmem [shape: f32[6,1], index: 2, kind: input, shape index: {}]
  %s3 = inlined_call_operand.vmem [shape: f32[4,6], index: 3, kind: input, shape index: {}]
  %s4 = inlined_call_operand.vmem [shape: f32[4,1], index: 4, kind: input, shape index: {}]
  %s5 = inlined_call_operand.vmem [shape: f32[1,4], index: 5, kind: input, shape index: {}]
  %s6 = inlined_call_operand.<no memory space> [shape: f32[1,1], index: 6, kind: input, shape index: {}]
  %s7 = inlined_call_operand.hbm [shape: f32[1,1000], index: 7, kind: output, shape index: {}]
  %s8 = sld [smem:[#allocation0]]
  $region42: #{tpu_custom_call.1} parent=0
    _
  %s10 = ssub.s32 1, %s8
  %s11 = scalar_select 0, %s10, %s8
  %v12 = vstv %s6
  %13 = vst [vmem:[#allocation2] sm:$0x1] %v12
  $region1: #{tpu_custom_call.1} parent=0
    #allocation3 [shape = 'u8[32768]{0}', space=vmem, size = 0x8000, scoped, tag = 'input window, operand 0, single buffered']
    #allocation4 [shape = 's32[1]{0}', space=sflag, size = 0x4, scoped, tag = 'scoped memory for tpu_custom_call.1']
    #allocation5 [shape = 's32[1]{0}', space=sflag, size = 0x4, scoped, tag = 'scoped memory for tpu_custom_call.1']
    #allocation6 [shape = 'u8[4096]{0}', space=vmem, size = 0x1000, scoped, tag = 'output window, operand 0, single buffered']
    %14 = vsyncpa [#allocation4], 0
    %15 = vsyncpa [#allocation5], 0
    // Predicated region
    $region2: #{tpu_custom_call.1} parent=1 // pred_check
      _
    $region3: #{tpu_custom_call.1} parent=1 // pred_check_branch
      %17 = sbr.rel (0) target = $region5
    $region4: #{tpu_custom_call.1} parent=1 // pred_region
      %19 = vsyncadd [#allocation4], 0
      %s21 = sshll.u32 %s0, 4
      %s22 = int_to_ptr.hbm [resolvable:$true] %s21
      %s23 = sshll.u32 [#allocation3], 4
      %s24 = int_to_ptr.vmem [resolvable:$true] %s23
      %26 = dma.hbm_to_vmem [thread:$0]  %s22, 1024, %s24, [#allocation4]
    $region5: #{tpu_custom_call.1} parent=1 // pred_fallthru
      _
    // Predicated region
    $region6: #{tpu_custom_call.1} parent=1 // pred_check
      _
    $region7: #{tpu_custom_call.1} parent=1 // pred_check_branch
      %28 = sbr.rel (0) target = $region9
    $region8: #{tpu_custom_call.1} parent=1 // pred_region
      _
    $region9: #{tpu_custom_call.1} parent=1 // pred_fallthru
      _
    // Predicated region
    $region10: #{tpu_custom_call.1} parent=1 // pred_check
      _
    $region11: #{tpu_custom_call.1} parent=1 // pred_check_branch
      %30 = sbr.rel (0) target = $region13
    $region12: #{tpu_custom_call.1} parent=1 // pred_region
      _
    $region13: #{tpu_custom_call.1} parent=1 // pred_fallthru
      _
    // Predicated region
    $region14: #{tpu_custom_call.1} parent=1 // pred_check
      _
    $region15: #{tpu_custom_call.1} parent=1 // pred_check_branch
      %32 = sbr.rel (0) target = $region17
    $region16: #{tpu_custom_call.1} parent=1 // pred_region
      _
    $region17: #{tpu_custom_call.1} parent=1 // pred_fallthru
      _
    // Predicated region
    $region18: #{tpu_custom_call.1} parent=1 // pred_check
      _
    $region19: #{tpu_custom_call.1} parent=1 // pred_check_branch
      %34 = sbr.rel (0) target = $region21
    $region20: #{tpu_custom_call.1} parent=1 // pred_region
      _
    $region21: #{tpu_custom_call.1} parent=1 // pred_fallthru
      _
    // Predicated region
    $region22: #{tpu_custom_call.1} parent=1 // pred_check
      _
    $region23: #{tpu_custom_call.1} parent=1 // pred_check_branch
      %36 = sbr.rel (0) target = $region25
    $region24: #{tpu_custom_call.1} parent=1 // pred_region
      _
    $region25: #{tpu_custom_call.1} parent=1 // pred_fallthru
      _
    // Predicated region
    $region26: #{tpu_custom_call.1} parent=1 // pred_check
      _
    $region27: #{tpu_custom_call.1} parent=1 // pred_check_branch
      %38 = sbr.rel (0) target = $region29
    $region28: #{tpu_custom_call.1} parent=1 // pred_region
      _
    $region29: #{tpu_custom_call.1} parent=1 // pred_fallthru
      _
    // Predicated region
    $region30: #{tpu_custom_call.1} parent=1 // pred_check
      _
    $region31: #{tpu_custom_call.1} parent=1 // pred_check_branch
      %40 = sbr.rel (0) target = $region33
    $region32: #{tpu_custom_call.1} parent=1 // pred_region
      %42 = dma.done [#allocation4], 1024
    $region33: #{tpu_custom_call.1} parent=1 // pred_fallthru
      _
    %v43 = vld [vmem:[%s1] sm:$0x3f]
    %v44 = vld [vmem:[%s2] sm:$0x3f]
    %v45 = vld [vmem:[%s3] sm:$0xf]
    %v46 = vld [vmem:[%s4] sm:$0xf]
    %v47 = vld [vmem:[%s5] sm:$0x1]
    %v48 = vld [vmem:[#allocation2] sm:$0x1]
    %v49 = vld [vmem:[#allocation3] sm:$0xff]
    %v50 = vld [vmem:[#allocation3 + $0x8] sm:$0xff]
    %v51 = vld [vmem:[#allocation3 + $0x10] sm:$0xff]
    %v52 = vld [vmem:[#allocation3 + $0x18] sm:$0xff]
    %v53 = vld [vmem:[#allocation3 + $0x20] sm:$0xff]
    %v54 = vld [vmem:[#allocation3 + $0x28] sm:$0xff]
    %v55 = vld [vmem:[#allocation3 + $0x30] sm:$0xff]
    %v56 = vld [vmem:[#allocation3 + $0x38] sm:$0xff]
    %58 = vset.pattern.permute.xlu0 0
    %59 = vperm.xlu0 %58, %v44
    %v60 = vpop.permute.xlu0 %59
    %vm62 = vcmask 64512
    %v64 = vsel %vm62, %v43, 0
    %66 = vmatpush.msra.mxu0 0.0
    %67 = vmatpush.msra.mxu0 0.0
    %68 = vmatpush.msra.mxu0 0.0
    %69 = vmatpush.msra.mxu0 0.0
    %70 = vmatpush.msra.mxu0 0.0
    %71 = vmatpush.msra.mxu0 0.0
    %72 = vmatpush.msra.mxu0 0.0
    %73 = vmatpush.msra.mxu0 0.0
    %74 = vmatpush.msra.mxu0 0.0
    %75 = vmatpush.msra.mxu0 0.0
    %76 = vmatpush.msra.mxu0 0.0
    %77 = vmatpush.msra.mxu0 0.0
    %78 = vmatpush.msra.mxu0 0.0
    %79 = vmatpush.msra.mxu0 0.0
    %80 = vmatpush.msra.mxu0 0.0
    %81 = vmatpush.msra.mxu0 %v49
    %82 = vmatmul.f32.gmra.mxu0 %v64
    %v83 = vpop.f32.mrf.mxu0
    %v84 = vadd.f32 %v60, %v83
    %85 = vdwg.mxu0
    %86 = vmatpush.msra.mxu0 0.0
    %87 = vmatpush.msra.mxu0 0.0
    %88 = vmatpush.msra.mxu0 0.0
    %89 = vmatpush.msra.mxu0 0.0
    %90 = vmatpush.msra.mxu0 0.0
    %91 = vmatpush.msra.mxu0 0.0
    %92 = vmatpush.msra.mxu0 0.0
    %93 = vmatpush.msra.mxu0 0.0
    %94 = vmatpush.msra.mxu0 0.0
    %95 = vmatpush.msra.mxu0 0.0
    %96 = vmatpush.msra.mxu0 0.0
    %97 = vmatpush.msra.mxu0 0.0
    %98 = vmatpush.msra.mxu0 0.0
    %99 = vmatpush.msra.mxu0 0.0
    %100 = vmatpush.msra.mxu0 0.0
    %101 = vmatpush.msra.mxu0 %v50
    %102 = vmatmul.f32.gmra.mxu0 %v64
    %v103 = vpop.f32.mrf.mxu0
    %v104 = vadd.f32 %v60, %v103
    %105 = vdwg.mxu0
    %106 = vmatpush.msra.mxu0 0.0
    %107 = vmatpush.msra.mxu0 0.0
    %108 = vmatpush.msra.mxu0 0.0
    %109 = vmatpush.msra.mxu0 0.0
    %110 = vmatpush.msra.mxu0 0.0
    %111 = vmatpush.msra.mxu0 0.0
    %112 = vmatpush.msra.mxu0 0.0
    %113 = vmatpush.msra.mxu0 0.0
    %114 = vmatpush.msra.mxu0 0.0
    %115 = vmatpush.msra.mxu0 0.0
    %116 = vmatpush.msra.mxu0 0.0
    %117 = vmatpush.msra.mxu0 0.0
    %118 = vmatpush.msra.mxu0 0.0
    %119 = vmatpush.msra.mxu0 0.0
    %120 = vmatpush.msra.mxu0 0.0
    %121 = vmatpush.msra.mxu0 %v51
    %122 = vmatmul.f32.gmra.mxu0 %v64
    %v123 = vpop.f32.mrf.mxu0
    %v124 = vadd.f32 %v60, %v123
    %125 = vdwg.mxu0
    %126 = vmatpush.msra.mxu0 0.0
    %127 = vmatpush.msra.mxu0 0.0
    %128 = vmatpush.msra.mxu0 0.0
    %129 = vmatpush.msra.mxu0 0.0
    %130 = vmatpush.msra.mxu0 0.0
    %131 = vmatpush.msra.mxu0 0.0
    %132 = vmatpush.msra.mxu0 0.0
    %133 = vmatpush.msra.mxu0 0.0
    %134 = vmatpush.msra.mxu0 0.0
    %135 = vmatpush.msra.mxu0 0.0
    %136 = vmatpush.msra.mxu0 0.0
    %137 = vmatpush.msra.mxu0 0.0
    %138 = vmatpush.msra.mxu0 0.0
    %139 = vmatpush.msra.mxu0 0.0
    %140 = vmatpush.msra.mxu0 0.0
    %141 = vmatpush.msra.mxu0 %v52
    %142 = vmatmul.f32.gmra.mxu0 %v64
    %v143 = vpop.f32.mrf.mxu0
    %v144 = vadd.f32 %v60, %v143
    %145 = vdwg.mxu0
    %146 = vmatpush.msra.mxu0 0.0
    %147 = vmatpush.msra.mxu0 0.0
    %148 = vmatpush.msra.mxu0 0.0
    %149 = vmatpush.msra.mxu0 0.0
    %150 = vmatpush.msra.mxu0 0.0
    %151 = vmatpush.msra.mxu0 0.0
    %152 = vmatpush.msra.mxu0 0.0
    %153 = vmatpush.msra.mxu0 0.0
    %154 = vmatpush.msra.mxu0 0.0
    %155 = vmatpush.msra.mxu0 0.0
    %156 = vmatpush.msra.mxu0 0.0
    %157 = vmatpush.msra.mxu0 0.0
    %158 = vmatpush.msra.mxu0 0.0
    %159 = vmatpush.msra.mxu0 0.0
    %160 = vmatpush.msra.mxu0 0.0
    %161 = vmatpush.msra.mxu0 %v53
    %162 = vmatmul.f32.gmra.mxu0 %v64
    %v163 = vpop.f32.mrf.mxu0
    %v164 = vadd.f32 %v60, %v163
    %165 = vdwg.mxu0
    %166 = vmatpush.msra.mxu0 0.0
    %167 = vmatpush.msra.mxu0 0.0
    %168 = vmatpush.msra.mxu0 0.0
    %169 = vmatpush.msra.mxu0 0.0
    %170 = vmatpush.msra.mxu0 0.0
    %171 = vmatpush.msra.mxu0 0.0
    %172 = vmatpush.msra.mxu0 0.0
    %173 = vmatpush.msra.mxu0 0.0
    %174 = vmatpush.msra.mxu0 0.0
    %175 = vmatpush.msra.mxu0 0.0
    %176 = vmatpush.msra.mxu0 0.0
    %177 = vmatpush.msra.mxu0 0.0
    %178 = vmatpush.msra.mxu0 0.0
    %179 = vmatpush.msra.mxu0 0.0
    %180 = vmatpush.msra.mxu0 0.0
    %181 = vmatpush.msra.mxu0 %v54
    %182 = vmatmul.f32.gmra.mxu0 %v64
    %v183 = vpop.f32.mrf.mxu0
    %v184 = vadd.f32 %v60, %v183
    %185 = vdwg.mxu0
    %186 = vmatpush.msra.mxu0 0.0
    %187 = vmatpush.msra.mxu0 0.0
    %188 = vmatpush.msra.mxu0 0.0
    %189 = vmatpush.msra.mxu0 0.0
    %190 = vmatpush.msra.mxu0 0.0
    %191 = vmatpush.msra.mxu0 0.0
    %192 = vmatpush.msra.mxu0 0.0
    %193 = vmatpush.msra.mxu0 0.0
    %194 = vmatpush.msra.mxu0 0.0
    %195 = vmatpush.msra.mxu0 0.0
    %196 = vmatpush.msra.mxu0 0.0
    %197 = vmatpush.msra.mxu0 0.0
    %198 = vmatpush.msra.mxu0 0.0
    %199 = vmatpush.msra.mxu0 0.0
    %200 = vmatpush.msra.mxu0 0.0
    %201 = vmatpush.msra.mxu0 %v55
    %202 = vmatmul.f32.gmra.mxu0 %v64
    %v203 = vpop.f32.mrf.mxu0
    %v204 = vadd.f32 %v60, %v203
    %205 = vdwg.mxu0
    %206 = vmatpush.msra.mxu0 0.0
    %207 = vmatpush.msra.mxu0 0.0
    %208 = vmatpush.msra.mxu0 0.0
    %209 = vmatpush.msra.mxu0 0.0
    %210 = vmatpush.msra.mxu0 0.0
    %211 = vmatpush.msra.mxu0 0.0
    %212 = vmatpush.msra.mxu0 0.0
    %213 = vmatpush.msra.mxu0 0.0
    %214 = vmatpush.msra.mxu0 0.0
    %215 = vmatpush.msra.mxu0 0.0
    %216 = vmatpush.msra.mxu0 0.0
    %217 = vmatpush.msra.mxu0 0.0
    %218 = vmatpush.msra.mxu0 0.0
    %219 = vmatpush.msra.mxu0 0.0
    %220 = vmatpush.msra.mxu0 0.0
    %221 = vmatpush.msra.mxu0 %v56
    %222 = vmatmul.f32.gmra.mxu0 %v64
    %v223 = vpop.f32.mrf.mxu0
    %v224 = vadd.f32 %v60, %v223
    %225 = vdwg.mxu0
    %v226 = vmax.f32 %v84, 0.0
    %v227 = vmax.f32 %v104, 0.0
    %v228 = vmax.f32 %v124, 0.0
    %v229 = vmax.f32 %v144, 0.0
    %v230 = vmax.f32 %v164, 0.0
    %v231 = vmax.f32 %v184, 0.0
    %v232 = vmax.f32 %v204, 0.0
    %v233 = vmax.f32 %v224, 0.0
    %235 = vset.pattern.permute.xlu0 0
    %236 = vperm.xlu0 %235, %v46
    %v237 = vpop.permute.xlu0 %236
    %vm239 = vcmask 48128
    %v241 = vsel %vm239, %v45, 0
    %vm243 = vcmask 1045504
    %v245 = vsel %vm243, %v226, 0
    %v248 = vsel %vm243, %v227, 0
    %v251 = vsel %vm243, %v228, 0
    %v254 = vsel %vm243, %v229, 0
    %v257 = vsel %vm243, %v230, 0
    %v260 = vsel %vm243, %v231, 0
    %v263 = vsel %vm243, %v232, 0
    %v266 = vsel %vm243, %v233, 0
    %268 = vmatpush.msra.mxu0 0.0
    %269 = vmatpush.msra.mxu0 0.0
    %270 = vmatpush.msra.mxu0 0.0
    %271 = vmatpush.msra.mxu0 0.0
    %272 = vmatpush.msra.mxu0 0.0
    %273 = vmatpush.msra.mxu0 0.0
    %274 = vmatpush.msra.mxu0 0.0
    %275 = vmatpush.msra.mxu0 0.0
    %276 = vmatpush.msra.mxu0 0.0
    %277 = vmatpush.msra.mxu0 0.0
    %278 = vmatpush.msra.mxu0 0.0
    %279 = vmatpush.msra.mxu0 0.0
    %280 = vmatpush.msra.mxu0 0.0
    %281 = vmatpush.msra.mxu0 0.0
    %282 = vmatpush.msra.mxu0 0.0
    %283 = vmatpush.msra.mxu0 %v245
    %284 = vmatmul.f32.gmra.mxu0 %v241
    %v285 = vpop.f32.mrf.mxu0
    %v286 = vadd.f32 %v237, %v285
    %287 = vdwg.mxu0
    %288 = vmatpush.msra.mxu0 0.0
    %289 = vmatpush.msra.mxu0 0.0
    %290 = vmatpush.msra.mxu0 0.0
    %291 = vmatpush.msra.mxu0 0.0
    %292 = vmatpush.msra.mxu0 0.0
    %293 = vmatpush.msra.mxu0 0.0
    %294 = vmatpush.msra.mxu0 0.0
    %295 = vmatpush.msra.mxu0 0.0
    %296 = vmatpush.msra.mxu0 0.0
    %297 = vmatpush.msra.mxu0 0.0
    %298 = vmatpush.msra.mxu0 0.0
    %299 = vmatpush.msra.mxu0 0.0
    %300 = vmatpush.msra.mxu0 0.0
    %301 = vmatpush.msra.mxu0 0.0
    %302 = vmatpush.msra.mxu0 0.0
    %303 = vmatpush.msra.mxu0 %v248
    %304 = vmatmul.f32.gmra.mxu0 %v241
    %v305 = vpop.f32.mrf.mxu0
    %v306 = vadd.f32 %v237, %v305
    %307 = vdwg.mxu0
    %308 = vmatpush.msra.mxu0 0.0
    %309 = vmatpush.msra.mxu0 0.0
    %310 = vmatpush.msra.mxu0 0.0
    %311 = vmatpush.msra.mxu0 0.0
    %312 = vmatpush.msra.mxu0 0.0
    %313 = vmatpush.msra.mxu0 0.0
    %314 = vmatpush.msra.mxu0 0.0
    %315 = vmatpush.msra.mxu0 0.0
    %316 = vmatpush.msra.mxu0 0.0
    %317 = vmatpush.msra.mxu0 0.0
    %318 = vmatpush.msra.mxu0 0.0
    %319 = vmatpush.msra.mxu0 0.0
    %320 = vmatpush.msra.mxu0 0.0
    %321 = vmatpush.msra.mxu0 0.0
    %322 = vmatpush.msra.mxu0 0.0
    %323 = vmatpush.msra.mxu0 %v251
    %324 = vmatmul.f32.gmra.mxu0 %v241
    %v325 = vpop.f32.mrf.mxu0
    %v326 = vadd.f32 %v237, %v325
    %327 = vdwg.mxu0
    %328 = vmatpush.msra.mxu0 0.0
    %329 = vmatpush.msra.mxu0 0.0
    %330 = vmatpush.msra.mxu0 0.0
    %331 = vmatpush.msra.mxu0 0.0
    %332 = vmatpush.msra.mxu0 0.0
    %333 = vmatpush.msra.mxu0 0.0
    %334 = vmatpush.msra.mxu0 0.0
    %335 = vmatpush.msra.mxu0 0.0
    %336 = vmatpush.msra.mxu0 0.0
    %337 = vmatpush.msra.mxu0 0.0
    %338 = vmatpush.msra.mxu0 0.0
    %339 = vmatpush.msra.mxu0 0.0
    %340 = vmatpush.msra.mxu0 0.0
    %341 = vmatpush.msra.mxu0 0.0
    %342 = vmatpush.msra.mxu0 0.0
    %343 = vmatpush.msra.mxu0 %v254
    %344 = vmatmul.f32.gmra.mxu0 %v241
    %v345 = vpop.f32.mrf.mxu0
    %v346 = vadd.f32 %v237, %v345
    %347 = vdwg.mxu0
    %348 = vmatpush.msra.mxu0 0.0
    %349 = vmatpush.msra.mxu0 0.0
    %350 = vmatpush.msra.mxu0 0.0
    %351 = vmatpush.msra.mxu0 0.0
    %352 = vmatpush.msra.mxu0 0.0
    %353 = vmatpush.msra.mxu0 0.0
    %354 = vmatpush.msra.mxu0 0.0
    %355 = vmatpush.msra.mxu0 0.0
    %356 = vmatpush.msra.mxu0 0.0
    %357 = vmatpush.msra.mxu0 0.0
    %358 = vmatpush.msra.mxu0 0.0
    %359 = vmatpush.msra.mxu0 0.0
    %360 = vmatpush.msra.mxu0 0.0
    %361 = vmatpush.msra.mxu0 0.0
    %362 = vmatpush.msra.mxu0 0.0
    %363 = vmatpush.msra.mxu0 %v257
    %364 = vmatmul.f32.gmra.mxu0 %v241
    %v365 = vpop.f32.mrf.mxu0
    %v366 = vadd.f32 %v237, %v365
    %367 = vdwg.mxu0
    %368 = vmatpush.msra.mxu0 0.0
    %369 = vmatpush.msra.mxu0 0.0
    %370 = vmatpush.msra.mxu0 0.0
    %371 = vmatpush.msra.mxu0 0.0
    %372 = vmatpush.msra.mxu0 0.0
    %373 = vmatpush.msra.mxu0 0.0
    %374 = vmatpush.msra.mxu0 0.0
    %375 = vmatpush.msra.mxu0 0.0
    %376 = vmatpush.msra.mxu0 0.0
    %377 = vmatpush.msra.mxu0 0.0
    %378 = vmatpush.msra.mxu0 0.0
    %379 = vmatpush.msra.mxu0 0.0
    %380 = vmatpush.msra.mxu0 0.0
    %381 = vmatpush.msra.mxu0 0.0
    %382 = vmatpush.msra.mxu0 0.0
    %383 = vmatpush.msra.mxu0 %v260
    %384 = vmatmul.f32.gmra.mxu0 %v241
    %v385 = vpop.f32.mrf.mxu0
    %v386 = vadd.f32 %v237, %v385
    %387 = vdwg.mxu0
    %388 = vmatpush.msra.mxu0 0.0
    %389 = vmatpush.msra.mxu0 0.0
    %390 = vmatpush.msra.mxu0 0.0
    %391 = vmatpush.msra.mxu0 0.0
    %392 = vmatpush.msra.mxu0 0.0
    %393 = vmatpush.msra.mxu0 0.0
    %394 = vmatpush.msra.mxu0 0.0
    %395 = vmatpush.msra.mxu0 0.0
    %396 = vmatpush.msra.mxu0 0.0
    %397 = vmatpush.msra.mxu0 0.0
    %398 = vmatpush.msra.mxu0 0.0
    %399 = vmatpush.msra.mxu0 0.0
    %400 = vmatpush.msra.mxu0 0.0
    %401 = vmatpush.msra.mxu0 0.0
    %402 = vmatpush.msra.mxu0 0.0
    %403 = vmatpush.msra.mxu0 %v263
    %404 = vmatmul.f32.gmra.mxu0 %v241
    %v405 = vpop.f32.mrf.mxu0
    %v406 = vadd.f32 %v237, %v405
    %407 = vdwg.mxu0
    %408 = vmatpush.msra.mxu0 0.0
    %409 = vmatpush.msra.mxu0 0.0
    %410 = vmatpush.msra.mxu0 0.0
    %411 = vmatpush.msra.mxu0 0.0
    %412 = vmatpush.msra.mxu0 0.0
    %413 = vmatpush.msra.mxu0 0.0
    %414 = vmatpush.msra.mxu0 0.0
    %415 = vmatpush.msra.mxu0 0.0
    %416 = vmatpush.msra.mxu0 0.0
    %417 = vmatpush.msra.mxu0 0.0
    %418 = vmatpush.msra.mxu0 0.0
    %419 = vmatpush.msra.mxu0 0.0
    %420 = vmatpush.msra.mxu0 0.0
    %421 = vmatpush.msra.mxu0 0.0
    %422 = vmatpush.msra.mxu0 0.0
    %423 = vmatpush.msra.mxu0 %v266
    %424 = vmatmul.f32.gmra.mxu0 %v241
    %v425 = vpop.f32.mrf.mxu0
    %v426 = vadd.f32 %v237, %v425
    %427 = vdwg.mxu0
    %v428 = vmax.f32 %v286, 0.0
    %v429 = vmax.f32 %v306, 0.0
    %v430 = vmax.f32 %v326, 0.0
    %v431 = vmax.f32 %v346, 0.0
    %v432 = vmax.f32 %v366, 0.0
    %v433 = vmax.f32 %v386, 0.0
    %v434 = vmax.f32 %v406, 0.0
    %v435 = vmax.f32 %v426, 0.0
    %437 = vset.pattern.permute.xlu0 0
    %438 = vperm.xlu0 %437, %v48
    %v439 = vpop.permute.xlu0 %438
    %v441 = vperm.slane %v439, 0
    %vm442 = vcmask 31744
    %v444 = vsel %vm442, %v47, 0
    %vm446 = vcmask 1043456
    %v448 = vsel %vm446, %v428, 0
    %v451 = vsel %vm446, %v429, 0
    %v454 = vsel %vm446, %v430, 0
    %v457 = vsel %vm446, %v431, 0
    %v460 = vsel %vm446, %v432, 0
    %v463 = vsel %vm446, %v433, 0
    %v466 = vsel %vm446, %v434, 0
    %v469 = vsel %vm446, %v435, 0
    %471 = vmatpush.msra.mxu0 0.0
    %472 = vmatpush.msra.mxu0 0.0
    %473 = vmatpush.msra.mxu0 0.0
    %474 = vmatpush.msra.mxu0 0.0
    %475 = vmatpush.msra.mxu0 0.0
    %476 = vmatpush.msra.mxu0 0.0
    %477 = vmatpush.msra.mxu0 0.0
    %478 = vmatpush.msra.mxu0 0.0
    %479 = vmatpush.msra.mxu0 0.0
    %480 = vmatpush.msra.mxu0 0.0
    %481 = vmatpush.msra.mxu0 0.0
    %482 = vmatpush.msra.mxu0 0.0
    %483 = vmatpush.msra.mxu0 0.0
    %484 = vmatpush.msra.mxu0 0.0
    %485 = vmatpush.msra.mxu0 0.0
    %486 = vmatpush.msra.mxu0 %v448
    %487 = vmatmul.f32.gmra.mxu0 %v444
    %v488 = vpop.f32.mrf.mxu0
    %v489 = vadd.f32 %v441, %v488
    %490 = vdwg.mxu0
    %491 = vmatpush.msra.mxu0 0.0
    %492 = vmatpush.msra.mxu0 0.0
    %493 = vmatpush.msra.mxu0 0.0
    %494 = vmatpush.msra.mxu0 0.0
    %495 = vmatpush.msra.mxu0 0.0
    %496 = vmatpush.msra.mxu0 0.0
    %497 = vmatpush.msra.mxu0 0.0
    %498 = vmatpush.msra.mxu0 0.0
    %499 = vmatpush.msra.mxu0 0.0
    %500 = vmatpush.msra.mxu0 0.0
    %501 = vmatpush.msra.mxu0 0.0
    %502 = vmatpush.msra.mxu0 0.0
    %503 = vmatpush.msra.mxu0 0.0
    %504 = vmatpush.msra.mxu0 0.0
    %505 = vmatpush.msra.mxu0 0.0
    %506 = vmatpush.msra.mxu0 %v451
    %507 = vmatmul.f32.gmra.mxu0 %v444
    %v508 = vpop.f32.mrf.mxu0
    %v509 = vadd.f32 %v441, %v508
    %510 = vdwg.mxu0
    %511 = vmatpush.msra.mxu0 0.0
    %512 = vmatpush.msra.mxu0 0.0
    %513 = vmatpush.msra.mxu0 0.0
    %514 = vmatpush.msra.mxu0 0.0
    %515 = vmatpush.msra.mxu0 0.0
    %516 = vmatpush.msra.mxu0 0.0
    %517 = vmatpush.msra.mxu0 0.0
    %518 = vmatpush.msra.mxu0 0.0
    %519 = vmatpush.msra.mxu0 0.0
    %520 = vmatpush.msra.mxu0 0.0
    %521 = vmatpush.msra.mxu0 0.0
    %522 = vmatpush.msra.mxu0 0.0
    %523 = vmatpush.msra.mxu0 0.0
    %524 = vmatpush.msra.mxu0 0.0
    %525 = vmatpush.msra.mxu0 0.0
    %526 = vmatpush.msra.mxu0 %v454
    %527 = vmatmul.f32.gmra.mxu0 %v444
    %v528 = vpop.f32.mrf.mxu0
    %v529 = vadd.f32 %v441, %v528
    %530 = vdwg.mxu0
    %531 = vmatpush.msra.mxu0 0.0
    %532 = vmatpush.msra.mxu0 0.0
    %533 = vmatpush.msra.mxu0 0.0
    %534 = vmatpush.msra.mxu0 0.0
    %535 = vmatpush.msra.mxu0 0.0
    %536 = vmatpush.msra.mxu0 0.0
    %537 = vmatpush.msra.mxu0 0.0
    %538 = vmatpush.msra.mxu0 0.0
    %539 = vmatpush.msra.mxu0 0.0
    %540 = vmatpush.msra.mxu0 0.0
    %541 = vmatpush.msra.mxu0 0.0
    %542 = vmatpush.msra.mxu0 0.0
    %543 = vmatpush.msra.mxu0 0.0
    %544 = vmatpush.msra.mxu0 0.0
    %545 = vmatpush.msra.mxu0 0.0
    %546 = vmatpush.msra.mxu0 %v457
    %547 = vmatmul.f32.gmra.mxu0 %v444
    %v548 = vpop.f32.mrf.mxu0
    %v549 = vadd.f32 %v441, %v548
    %550 = vdwg.mxu0
    %551 = vmatpush.msra.mxu0 0.0
    %552 = vmatpush.msra.mxu0 0.0
    %553 = vmatpush.msra.mxu0 0.0
    %554 = vmatpush.msra.mxu0 0.0
    %555 = vmatpush.msra.mxu0 0.0
    %556 = vmatpush.msra.mxu0 0.0
    %557 = vmatpush.msra.mxu0 0.0
    %558 = vmatpush.msra.mxu0 0.0
    %559 = vmatpush.msra.mxu0 0.0
    %560 = vmatpush.msra.mxu0 0.0
    %561 = vmatpush.msra.mxu0 0.0
    %562 = vmatpush.msra.mxu0 0.0
    %563 = vmatpush.msra.mxu0 0.0
    %564 = vmatpush.msra.mxu0 0.0
    %565 = vmatpush.msra.mxu0 0.0
    %566 = vmatpush.msra.mxu0 %v460
    %567 = vmatmul.f32.gmra.mxu0 %v444
    %v568 = vpop.f32.mrf.mxu0
    %v569 = vadd.f32 %v441, %v568
    %570 = vdwg.mxu0
    %571 = vmatpush.msra.mxu0 0.0
    %572 = vmatpush.msra.mxu0 0.0
    %573 = vmatpush.msra.mxu0 0.0
    %574 = vmatpush.msra.mxu0 0.0
    %575 = vmatpush.msra.mxu0 0.0
    %576 = vmatpush.msra.mxu0 0.0
    %577 = vmatpush.msra.mxu0 0.0
    %578 = vmatpush.msra.mxu0 0.0
    %579 = vmatpush.msra.mxu0 0.0
    %580 = vmatpush.msra.mxu0 0.0
    %581 = vmatpush.msra.mxu0 0.0
    %582 = vmatpush.msra.mxu0 0.0
    %583 = vmatpush.msra.mxu0 0.0
    %584 = vmatpush.msra.mxu0 0.0
    %585 = vmatpush.msra.mxu0 0.0
    %586 = vmatpush.msra.mxu0 %v463
    %587 = vmatmul.f32.gmra.mxu0 %v444
    %v588 = vpop.f32.mrf.mxu0
    %v589 = vadd.f32 %v441, %v588
    %590 = vdwg.mxu0
    %591 = vmatpush.msra.mxu0 0.0
    %592 = vmatpush.msra.mxu0 0.0
    %593 = vmatpush.msra.mxu0 0.0
    %594 = vmatpush.msra.mxu0 0.0
    %595 = vmatpush.msra.mxu0 0.0
    %596 = vmatpush.msra.mxu0 0.0
    %597 = vmatpush.msra.mxu0 0.0
    %598 = vmatpush.msra.mxu0 0.0
    %599 = vmatpush.msra.mxu0 0.0
    %600 = vmatpush.msra.mxu0 0.0
    %601 = vmatpush.msra.mxu0 0.0
    %602 = vmatpush.msra.mxu0 0.0
    %603 = vmatpush.msra.mxu0 0.0
    %604 = vmatpush.msra.mxu0 0.0
    %605 = vmatpush.msra.mxu0 0.0
    %606 = vmatpush.msra.mxu0 %v466
    %607 = vmatmul.f32.gmra.mxu0 %v444
    %v608 = vpop.f32.mrf.mxu0
    %v609 = vadd.f32 %v441, %v608
    %610 = vdwg.mxu0
    %611 = vmatpush.msra.mxu0 0.0
    %612 = vmatpush.msra.mxu0 0.0
    %613 = vmatpush.msra.mxu0 0.0
    %614 = vmatpush.msra.mxu0 0.0
    %615 = vmatpush.msra.mxu0 0.0
    %616 = vmatpush.msra.mxu0 0.0
    %617 = vmatpush.msra.mxu0 0.0
    %618 = vmatpush.msra.mxu0 0.0
    %619 = vmatpush.msra.mxu0 0.0
    %620 = vmatpush.msra.mxu0 0.0
    %621 = vmatpush.msra.mxu0 0.0
    %622 = vmatpush.msra.mxu0 0.0
    %623 = vmatpush.msra.mxu0 0.0
    %624 = vmatpush.msra.mxu0 0.0
    %625 = vmatpush.msra.mxu0 0.0
    %626 = vmatpush.msra.mxu0 %v469
    %627 = vmatmul.f32.gmra.mxu0 %v444
    %v628 = vpop.f32.mrf.mxu0
    %v629 = vadd.f32 %v441, %v628
    %630 = vdwg.mxu0
    %v631 = vxor.u32 %v489, 2147483648
    %v632 = vxor.u32 %v509, 2147483648
    %v633 = vxor.u32 %v529, 2147483648
    %v634 = vxor.u32 %v549, 2147483648
    %v635 = vxor.u32 %v569, 2147483648
    %v636 = vxor.u32 %v589, 2147483648
    %v637 = vxor.u32 %v609, 2147483648
    %v638 = vxor.u32 %v629, 2147483648
    %v639 = vmul.f32 %v631, 1.442695
    %v640 = vpow.pop %v639
    %v641 = vmul.f32 %v632, 1.442695
    %v642 = vpow.pop %v641
    %v643 = vmul.f32 %v633, 1.442695
    %v644 = vpow.pop %v643
    %v645 = vmul.f32 %v634, 1.442695
    %v646 = vpow.pop %v645
    %v647 = vmul.f32 %v635, 1.442695
    %v648 = vpow.pop %v647
    %v649 = vmul.f32 %v636, 1.442695
    %v650 = vpow.pop %v649
    %v651 = vmul.f32 %v637, 1.442695
    %v652 = vpow.pop %v651
    %v653 = vmul.f32 %v638, 1.442695
    %v654 = vpow.pop %v653
    %v655 = vadd.f32 %v640, 1.0
    %v656 = vadd.f32 %v642, 1.0
    %v657 = vadd.f32 %v644, 1.0
    %v658 = vadd.f32 %v646, 1.0
    %v659 = vadd.f32 %v648, 1.0
    %v660 = vadd.f32 %v650, 1.0
    %v661 = vadd.f32 %v652, 1.0
    %v662 = vadd.f32 %v654, 1.0
    %v663 = vrcp.pop %v655
    %v664 = vmul.f32 %v655, %v663
    %v665 = vsub.f32 1.0, %v664
    %v666 = vmul.f32 %v663, %v665
    %v667 = vadd.f32 %v663, %v666
    %vm668 = vweird.f32 %v655
    %vm669 = vweird.f32 %v663
    %vm670 = vmor %vm668, %vm669
    %v671 = vsel %vm670, %v663, %v667
    %v672 = vand.u32 2147483647, %v655
    %vm673 = vcmp.eq.f32.partialorder %v672, 8.507059e+37
    %v674 = vand.u32 %v655, 2147483648
    %v675 = vor.u32 1.1754944e-38, %v674
    %v676 = vsel %vm673, %v675, %v671
    %v677 = vmul.f32 1.0, %v676
    %v678 = vrcp.pop %v656
    %v679 = vmul.f32 %v656, %v678
    %v680 = vsub.f32 1.0, %v679
    %v681 = vmul.f32 %v678, %v680
    %v682 = vadd.f32 %v678, %v681
    %vm683 = vweird.f32 %v656
    %vm684 = vweird.f32 %v678
    %vm685 = vmor %vm683, %vm684
    %v686 = vsel %vm685, %v678, %v682
    %v687 = vand.u32 2147483647, %v656
    %vm688 = vcmp.eq.f32.partialorder %v687, 8.507059e+37
    %v689 = vand.u32 %v656, 2147483648
    %v690 = vor.u32 1.1754944e-38, %v689
    %v691 = vsel %vm688, %v690, %v686
    %v692 = vmul.f32 1.0, %v691
    %v693 = vrcp.pop %v657
    %v694 = vmul.f32 %v657, %v693
    %v695 = vsub.f32 1.0, %v694
    %v696 = vmul.f32 %v693, %v695
    %v697 = vadd.f32 %v693, %v696
    %vm698 = vweird.f32 %v657
    %vm699 = vweird.f32 %v693
    %vm700 = vmor %vm698, %vm699
    %v701 = vsel %vm700, %v693, %v697
    %v702 = vand.u32 2147483647, %v657
    %vm703 = vcmp.eq.f32.partialorder %v702, 8.507059e+37
    %v704 = vand.u32 %v657, 2147483648
    %v705 = vor.u32 1.1754944e-38, %v704
    %v706 = vsel %vm703, %v705, %v701
    %v707 = vmul.f32 1.0, %v706
    %v708 = vrcp.pop %v658
    %v709 = vmul.f32 %v658, %v708
    %v710 = vsub.f32 1.0, %v709
    %v711 = vmul.f32 %v708, %v710
    %v712 = vadd.f32 %v708, %v711
    %vm713 = vweird.f32 %v658
    %vm714 = vweird.f32 %v708
    %vm715 = vmor %vm713, %vm714
    %v716 = vsel %vm715, %v708, %v712
    %v717 = vand.u32 2147483647, %v658
    %vm718 = vcmp.eq.f32.partialorder %v717, 8.507059e+37
    %v719 = vand.u32 %v658, 2147483648
    %v720 = vor.u32 1.1754944e-38, %v719
    %v721 = vsel %vm718, %v720, %v716
    %v722 = vmul.f32 1.0, %v721
    %v723 = vrcp.pop %v659
    %v724 = vmul.f32 %v659, %v723
    %v725 = vsub.f32 1.0, %v724
    %v726 = vmul.f32 %v723, %v725
    %v727 = vadd.f32 %v723, %v726
    %vm728 = vweird.f32 %v659
    %vm729 = vweird.f32 %v723
    %vm730 = vmor %vm728, %vm729
    %v731 = vsel %vm730, %v723, %v727
    %v732 = vand.u32 2147483647, %v659
    %vm733 = vcmp.eq.f32.partialorder %v732, 8.507059e+37
    %v734 = vand.u32 %v659, 2147483648
    %v735 = vor.u32 1.1754944e-38, %v734
    %v736 = vsel %vm733, %v735, %v731
    %v737 = vmul.f32 1.0, %v736
    %v738 = vrcp.pop %v660
    %v739 = vmul.f32 %v660, %v738
    %v740 = vsub.f32 1.0, %v739
    %v741 = vmul.f32 %v738, %v740
    %v742 = vadd.f32 %v738, %v741
    %vm743 = vweird.f32 %v660
    %vm744 = vweird.f32 %v738
    %vm745 = vmor %vm743, %vm744
    %v746 = vsel %vm745, %v738, %v742
    %v747 = vand.u32 2147483647, %v660
    %vm748 = vcmp.eq.f32.partialorder %v747, 8.507059e+37
    %v749 = vand.u32 %v660, 2147483648
    %v750 = vor.u32 1.1754944e-38, %v749
    %v751 = vsel %vm748, %v750, %v746
    %v752 = vmul.f32 1.0, %v751
    %v753 = vrcp.pop %v661
    %v754 = vmul.f32 %v661, %v753
    %v755 = vsub.f32 1.0, %v754
    %v756 = vmul.f32 %v753, %v755
    %v757 = vadd.f32 %v753, %v756
    %vm758 = vweird.f32 %v661
    %vm759 = vweird.f32 %v753
    %vm760 = vmor %vm758, %vm759
    %v761 = vsel %vm760, %v753, %v757
    %v762 = vand.u32 2147483647, %v661
    %vm763 = vcmp.eq.f32.partialorder %v762, 8.507059e+37
    %v764 = vand.u32 %v661, 2147483648
    %v765 = vor.u32 1.1754944e-38, %v764
    %v766 = vsel %vm763, %v765, %v761
    %v767 = vmul.f32 1.0, %v766
    %v768 = vrcp.pop %v662
    %v769 = vmul.f32 %v662, %v768
    %v770 = vsub.f32 1.0, %v769
    %v771 = vmul.f32 %v768, %v770
    %v772 = vadd.f32 %v768, %v771
    %vm773 = vweird.f32 %v662
    %vm774 = vweird.f32 %v768
    %vm775 = vmor %vm773, %vm774
    %v776 = vsel %vm775, %v768, %v772
    %v777 = vand.u32 2147483647, %v662
    %vm778 = vcmp.eq.f32.partialorder %v777, 8.507059e+37
    %v779 = vand.u32 %v662, 2147483648
    %v780 = vor.u32 1.1754944e-38, %v779
    %v781 = vsel %vm778, %v780, %v776
    %v782 = vmul.f32 1.0, %v781
    %v791 = vrot.slane %v692, 7
    %v792 = vrot.slane %v707, 6
    %v793 = vrot.slane %v722, 5
    %v794 = vrot.slane %v737, 4
    %v795 = vrot.slane %v752, 3
    %v796 = vrot.slane %v767, 2
    %v797 = vrot.slane %v782, 1
    %vm798 = vcmask 1040384
    %v799 = vsel %vm798, %v677, %v791
    %vm800 = vcmask 1042434
    %v801 = vsel %vm800, %v792, %v793
    %vm802 = vcmask 1041408
    %v803 = vsel %vm802, %v799, %v801
    %vm804 = vcmask 1044484
    %v805 = vsel %vm804, %v794, %v795
    %vm806 = vcmask 1046534
    %v807 = vsel %vm806, %v796, %v797
    %vm808 = vcmask 1045508
    %v809 = vsel %vm808, %v805, %v807
    %v810 = vsel %vm446, %v803, %v809
    %812 = vst [vmem:[#allocation6] sm:$0xff] %v810
    // Predicated region
    $region34: #{tpu_custom_call.1} parent=1 // pred_check
      _
    $region35: #{tpu_custom_call.1} parent=1 // pred_check_branch
      %814 = sbr.rel (0) target = $region37
    $region36: #{tpu_custom_call.1} parent=1 // pred_region
      %816 = vsyncadd [#allocation5], 0
      %s818 = sshll.u32 [#allocation6], 4
      %s819 = int_to_ptr.vmem [resolvable:$true] %s818
      %s820 = sshll.u32 %s7, 4
      %s821 = int_to_ptr.hbm [resolvable:$true] %s820
      %823 = dma.vmem_to_hbm [thread:$0]  %s819, 128, %s821, [#allocation5]
    $region37: #{tpu_custom_call.1} parent=1 // pred_fallthru
      _
    // Predicated region
    $region38: #{tpu_custom_call.1} parent=1 // pred_check
      _
    $region39: #{tpu_custom_call.1} parent=1 // pred_check_branch
      %825 = sbr.rel (0) target = $region41
    $region40: #{tpu_custom_call.1} parent=1 // pred_region
      %827 = dma.done [#allocation5], 128
    $region41: #{tpu_custom_call.1} parent=1 // pred_fallthru
      _
    %828 = vsyncpa [#allocation4], 1
    %829 = vsyncpa [#allocation5], 1

</llo_original>
